<compile_context>
chip_gen: v7x
topology: tpu7x:2x2x1
jax: 0.10.0
libtpu: 0.0.40
codegen_flags: <defaults>
</compile_context>

<pallas_src>
import jax
import jax.numpy as jnp
import numpy as np
from jax.experimental import pallas as pl
from jax.experimental.pallas import tpu as pltpu

IN_X = 1425   # image-feature width of the module
IN_Y = 10     # condition (yVector) width
D_IN, H1, H2, H3 = IN_X + IN_Y, 500, 50, 1


def _round_up(x, m):
    return ((x + m - 1) // m) * m


def discriminator_kernel(x_ref, y_ref, wa_ref, wb_ref, b_ref, out_ref):
    # x_ref: (TB, 1425)  y_ref: (TB, 10)
    # wa_ref: (1, 1425)  wb_ref: (1, 10)  b_ref: (1, 1)  out_ref: (TB, 1)
    # Whole collapsed affine map: VPU multiply + XLU lane reduction, sigmoid on
    # the EUP.  No MXU needed for a K-reduce to N=1.  Inputs may arrive as
    # bf16 (bandwidth option); the reduction always accumulates in f32.
    x = x_ref[...].astype(jnp.float32)
    y = y_ref[...].astype(jnp.float32)
    wa = wa_ref[...].astype(jnp.float32)
    wb = wb_ref[...].astype(jnp.float32)
    logit = (
        jnp.sum(x * wa, axis=-1, keepdims=True)
        + jnp.sum(y * wb, axis=-1, keepdims=True)
        + b_ref[...]
    )
    out_ref[...] = jax.nn.sigmoid(logit)


def collapse_discriminator_params(params):
    """Exact collapse of l1/l2/adv_layer into one affine map (done once).

    Valid because the module applies no nonlinearity between the Linears
    (only the final Sigmoid).  Composition is done in float64 on the host so
    the collapsed weights match the uncollapsed 3-matmul f32 reference to
    ~f32 rounding.
    """
    w1, b1, w2, b2, w3, b3 = (np.asarray(p, dtype=np.float64) for p in params)
    w_eff = (w1 @ w2) @ w3                    # (1435, 1)
    b_eff = (b1 @ w2) @ w3 + b2 @ w3 + b3     # (1, 1)
    # Split the concat dimension so the kernel never needs torch.cat, and
    # store as rows (1, K) so they lane-broadcast against (TB, K) tiles.
    wa = jnp.asarray(w_eff[:IN_X].T, dtype=jnp.float32)   # (1, 1425)
    wb = jnp.asarray(w_eff[IN_X:].T, dtype=jnp.float32)   # (1, 10)
    b_eff = jnp.asarray(b_eff, dtype=jnp.float32)         # (1, 1)
    return wa, wb, b_eff


def _choose_batch_tile(batch, tb):
    """Largest legal batch tile <= min(tb, batch).

    Tile is either a multiple of 8 (f32 sublane quantum) or equal to the full
    batch dim (legal per the BlockSpec rules), and never exceeds the array.
    """
    tb = max(8, (int(tb) // 8) * 8)
    if batch <= 8:
        return batch                       # single block == full batch dim
    return max(8, (min(tb, batch) // 8) * 8)


def discriminator_forward(inp, y_vec, collapsed_params, *, tb=1024,
                          vmem_limit_bytes=32 << 20,
                          cast_inputs_to_bf16=False):
    """inp: (B, 1425), y_vec: (B, 10) -> (B, 1) f32 probabilities.

    Per-generation tuning of this HBM-bound kernel (compute has ~4x slack):
      * default tb=1024 / 32 MiB vmem limit is safe on v5e, v6e and v7x.
        (v5e's scoped-VMEM default is only 16 MiB, so the explicit limit is
        required for tb >= 1024; v7x has 64 MiB physical per TC, keep the
        limit <= ~48 MiB there.)
      * v5e/v6e (128 MiB physical VMEM) may use tb=2048, vmem_limit 64<<20 for
        a small (~1-3%) extra win.
      * cast_inputs_to_bf16 halves input HBM bytes (~2x throughput) while the
        row reduction still accumulates in f32; needs an accuracy sign-off.
    """
    wa, wb, b_eff = collapsed_params
    B = int(inp.shape[0])
    tb_eff = _choose_batch_tile(B, tb)
    grid = (pl.cdiv(B, tb_eff),)           # ragged last block handled by Pallas

    if cast_inputs_to_bf16:
        inp = inp.astype(jnp.bfloat16)
        wa = wa.astype(jnp.bfloat16)

    # Advisory scheduling hint for XLA around the custom call (memory-bound).
    bytes_accessed = int(
        inp.size * inp.dtype.itemsize
        + y_vec.size * y_vec.dtype.itemsize
        + wa.size * wa.dtype.itemsize
        + wb.size * wb.dtype.itemsize
        + b_eff.size * b_eff.dtype.itemsize
        + B * 4)
    cost = pl.CostEstimate(flops=2 * B * D_IN + 3 * B,
                           transcendentals=B,
                           bytes_accessed=bytes_accessed)

    return pl.pallas_call(
        discriminator_kernel,
        out_shape=jax.ShapeDtypeStruct((B, 1), jnp.float32),
        grid=grid,
        in_specs=[
            pl.BlockSpec((tb_eff, IN_X), lambda i: (i, 0)),   # x tile, pipelined
            pl.BlockSpec((tb_eff, IN_Y), lambda i: (i, 0)),   # y tile, pipelined
            pl.BlockSpec((1, IN_X), lambda i: (0, 0)),        # resident weights
            pl.BlockSpec((1, IN_Y), lambda i: (0, 0)),
            pl.BlockSpec((1, 1), lambda i: (0, 0)),
        ],
        out_specs=pl.BlockSpec((tb_eff, 1), lambda i: (i, 0)),
        compiler_params=pltpu.CompilerParams(
            # Batch axis is embarrassingly parallel; on v7x this lets the grid
            # shard across the 2 TensorCores (try pltpu.CORE_PARALLEL there if
            # a single TC can't saturate the 3.2 TB/s HBM).
            dimension_semantics=("parallel",),
            vmem_limit_bytes=int(vmem_limit_bytes),
        ),
        cost_estimate=cost,
    )(inp, y_vec, wa, wb, b_eff)


def _make_linear_params(kw, kb, fan_in, fan_out):
    # Deterministic init mimicking PyTorch nn.Linear default: U(+-1/sqrt(fan_in)).
    bound = float(fan_in) ** -0.5
    w = jax.random.uniform(kw, (fan_in, fan_out), jnp.float32, -bound, bound)
    b = jax.random.uniform(kb, (1, fan_out), jnp.float32, -bound, bound)
    return w, b


def _reference(x, y, params):
    # Pure-JAX reference in the original (uncollapsed) 3-layer form — same
    # math as the PyTorch forward.
    w1, b1, w2, b2, w3, b3 = params
    h = jnp.concatenate([x, y], axis=1) @ w1 + b1
    h = h @ w2 + b2
    return jax.nn.sigmoid(h @ w3 + b3)


if __name__ == "__main__":
    key = jax.random.PRNGKey(0)
    keys = jax.random.split(key, 10)

    w1, b1 = _make_linear_params(keys[0], keys[1], D_IN, H1)
    w2, b2 = _make_linear_params(keys[2], keys[3], H1, H2)
    w3, b3 = _make_linear_params(keys[4], keys[5], H2, H3)
    params = (w1, b1, w2, b2, w3, b3)
    collapsed = collapse_discriminator_params(params)

    # Case 1: small batch, single block, default settings.
    B1 = 8
    x1 = jax.random.normal(keys[6], (B1, IN_X), jnp.float32)
    y1 = jax.random.normal(keys[7], (B1, IN_Y), jnp.float32)
    o1 = discriminator_forward(x1, y1, collapsed)
    jax.block_until_ready(o1)
    assert o1.shape == (B1, 1)
    assert jnp.allclose(o1, _reference(x1, y1, params), atol=1e-4), \
        "kernel/reference mismatch (case 1)"

    # Case 2: ragged batch (B % tile != 0), multi-step grid — exercises the
    # pl.cdiv boundary block that replaced the wrapper-side jnp.pad.
    B2 = 20
    x2 = jax.random.normal(keys[8], (B2, IN_X), jnp.float32)
    y2 = jax.random.normal(keys[9], (B2, IN_Y), jnp.float32)
    o2 = discriminator_forward(x2, y2, collapsed, tb=8)
    jax.block_until_ready(o2)
    assert o2.shape == (B2, 1)
    assert jnp.allclose(o2, _reference(x2, y2, params), atol=1e-4), \
        "kernel/reference mismatch (case 2, ragged batch)"

    # Case 3: optional bf16-input path (halves HBM bytes; f32 accumulation).
    B3 = 32
    x3 = jax.random.normal(keys[6], (B3, IN_X), jnp.float32)
    y3 = jax.random.normal(keys[7], (B3, IN_Y), jnp.float32)
    o3 = discriminator_forward(x3, y3, collapsed, cast_inputs_to_bf16=True)
    jax.block_until_ready(o3)
    assert o3.shape == (B3, 1)
    assert jnp.allclose(o3, _reference(x3, y3, params), atol=5e-3), \
        "kernel/reference mismatch (case 3, bf16 inputs)"

    print("KERNEL_OK")
</pallas_src>

<mosaic_0001>
module attributes {stable_mosaic.version = 11 : i64} {
  func.func @discriminator_kernel(%arg0: i32, %arg1: memref<8x1425xf32, #tpu.memory_space<vmem>>, %arg2: memref<8x10xf32, #tpu.memory_space<vmem>>, %arg3: memref<1x1425xf32, #tpu.memory_space<vmem>>, %arg4: memref<1x10xf32, #tpu.memory_space<vmem>>, %arg5: memref<1x1xf32, #tpu.memory_space<vmem>>, %arg6: memref<8x1xf32, #tpu.memory_space<vmem>>) attributes {dimension_semantics = [#tpu.dimension_semantics<parallel>], iteration_bounds = array<i64: 1>, scalar_prefetch = 0 : i64, scratch_operands = 0 : i64, tpu.core_type = #tpu.core_type<tc>, window_params = [{transform_indices = @transform_0, window_bounds = array<i64: 8, 1425>}, {transform_indices = @transform_1, window_bounds = array<i64: 8, 10>}, {pipeline_mode = #tpu.pipeline_mode<synchronous>, transform_indices = @transform_2, window_bounds = array<i64: 1, 1425>}, {pipeline_mode = #tpu.pipeline_mode<synchronous>, transform_indices = @transform_3, window_bounds = array<i64: 1, 10>}, {pipeline_mode = #tpu.pipeline_mode<synchronous>, transform_indices = @transform_4, window_bounds = array<i64: 1, 1>}, {transform_indices = @transform_5, window_bounds = array<i64: 8, 1>}]} {
    %c0 = arith.constant 0 : index
    %c0_0 = arith.constant 0 : index
    %0 = vector.load %arg1[%c0, %c0_0] : memref<8x1425xf32, #tpu.memory_space<vmem>>, vector<8x1425xf32>
    %c0_1 = arith.constant 0 : index
    %c0_2 = arith.constant 0 : index
    %1 = vector.load %arg2[%c0_1, %c0_2] : memref<8x10xf32, #tpu.memory_space<vmem>>, vector<8x10xf32>
    %c0_3 = arith.constant 0 : index
    %c0_4 = arith.constant 0 : index
    %2 = vector.load %arg3[%c0_3, %c0_4] : memref<1x1425xf32, #tpu.memory_space<vmem>>, vector<1x1425xf32>
    %c0_5 = arith.constant 0 : index
    %c0_6 = arith.constant 0 : index
    %3 = vector.load %arg4[%c0_5, %c0_6] : memref<1x10xf32, #tpu.memory_space<vmem>>, vector<1x10xf32>
    %4 = vector.broadcast %2 : vector<1x1425xf32> to vector<8x1425xf32>
    %5 = arith.mulf %0, %4 : vector<8x1425xf32>
    %cst = arith.constant dense<0.000000e+00> : vector<8xf32>
    %6 = vector.multi_reduction <add>, %5, %cst [1] : vector<8x1425xf32> to vector<8xf32>
    %7 = vector.shape_cast %6 : vector<8xf32> to vector<8x1xf32>
    %8 = vector.broadcast %3 : vector<1x10xf32> to vector<8x10xf32>
    %9 = arith.mulf %1, %8 : vector<8x10xf32>
    %cst_7 = arith.constant dense<0.000000e+00> : vector<8xf32>
    %10 = vector.multi_reduction <add>, %9, %cst_7 [1] : vector<8x10xf32> to vector<8xf32>
    %11 = vector.shape_cast %10 : vector<8xf32> to vector<8x1xf32>
    %12 = arith.addf %7, %11 : vector<8x1xf32>
    %c0_8 = arith.constant 0 : index
    %c0_9 = arith.constant 0 : index
    %13 = vector.load %arg5[%c0_8, %c0_9] : memref<1x1xf32, #tpu.memory_space<vmem>>, vector<1x1xf32>
    %14 = vector.broadcast %13 : vector<1x1xf32> to vector<8x1xf32>
    %15 = arith.addf %12, %14 : vector<8x1xf32>
    %16 = arith.negf %15 : vector<8x1xf32>
    %17 = math.exp %16 : vector<8x1xf32>
    %cst_10 = arith.constant 1.000000e+00 : f32
    %18 = vector.broadcast %cst_10 : f32 to vector<8x1xf32>
    %19 = arith.addf %18, %17 : vector<8x1xf32>
    %20 = arith.divf %18, %19 : vector<8x1xf32>
    %c0_11 = arith.constant 0 : index
    %c0_12 = arith.constant 0 : index
    %21 = vector.load %arg6[%c0_11, %c0_12] : memref<8x1xf32, #tpu.memory_space<vmem>>, vector<8x1xf32>
    tpu.vector_store %arg6[%c0_11, %c0_12], %20 {strides = array<i32>} : memref<8x1xf32, #tpu.memory_space<vmem>>, vector<8x1xf32>,
    return
  }
  func.func @transform_0(%arg0: i32) -> (i32, i32) {
    %c0_i32 = arith.constant 0 : i32
    %c0_i32_0 = arith.constant 0 : i32
    return %arg0, %c0_i32 : i32, i32
  }
  func.func @transform_1(%arg0: i32) -> (i32, i32) {
    %c0_i32 = arith.constant 0 : i32
    %c0_i32_0 = arith.constant 0 : i32
    return %arg0, %c0_i32 : i32, i32
  }
  func.func @transform_2(%arg0: i32) -> (i32, i32) {
    %c0_i32 = arith.constant 0 : i32
    %c0_i32_0 = arith.constant 0 : i32
    %c0_i32_1 = arith.constant 0 : i32
    return %c0_i32, %c0_i32_0 : i32, i32
  }
  func.func @transform_3(%arg0: i32) -> (i32, i32) {
    %c0_i32 = arith.constant 0 : i32
    %c0_i32_0 = arith.constant 0 : i32
    %c0_i32_1 = arith.constant 0 : i32
    return %c0_i32, %c0_i32_0 : i32, i32
  }
  func.func @transform_4(%arg0: i32) -> (i32, i32) {
    %c0_i32 = arith.constant 0 : i32
    %c0_i32_0 = arith.constant 0 : i32
    %c0_i32_1 = arith.constant 0 : i32
    return %c0_i32, %c0_i32_0 : i32, i32
  }
  func.func @transform_5(%arg0: i32) -> (i32, i32) {
    %c0_i32 = arith.constant 0 : i32
    %c0_i32_0 = arith.constant 0 : i32
    return %arg0, %c0_i32 : i32, i32
  }
}

</mosaic_0001>

<llo_original>
// kernel: tpu_custom_call.1
$region0: #{tpu_custom_call.1}
  #allocation0 [shape = 'u32[]', space=smem, size = 0x4, offset = 0x4, fixed_abs, tag = 'smem constant byte address 0x4 - core index']
  #allocation1 [shape = 'u32[144,128]{1,0:T(1,128)}', space=vmem, size = 0x12000, scoped, tag = 'internal scratch']
  #allocation2 [shape = 'f32[1,1]{1,0:T(1,128)S(1)}', space=vmem, size = 0x200, scoped, tag = 'scoped memory for tpu_custom_call.1']
  %s0 = inlined_call_operand.hbm [shape: f32[8,1425], index: 0, kind: input, shape index: {}]
  %s1 = inlined_call_operand.hbm [shape: f32[8,10], index: 1, kind: input, shape index: {}]
  %s2 = inlined_call_operand.hbm [shape: f32[1,1425], index: 2, kind: input, shape index: {}]
  %s3 = inlined_call_operand.vmem [shape: f32[1,10], index: 3, kind: input, shape index: {}]
  %s4 = inlined_call_operand.<no memory space> [shape: f32[1,1], index: 4, kind: input, shape index: {}]
  %s5 = inlined_call_operand.vmem [shape: f32[8,1], index: 5, kind: output, shape index: {}]
  %s6 = sld [smem:[#allocation0]]
  $region42: #{tpu_custom_call.1} parent=0
    _
  %s8 = ssub.s32 1, %s6
  %s9 = scalar_select 0, %s8, %s6
  %v10 = vstv %s4
  %11 = vst [vmem:[#allocation2] sm:$0x1] %v10
  $region1: #{tpu_custom_call.1} parent=0
    #allocation3 [shape = 'u8[49152]{0}', space=vmem, size = 0xc000, scoped, tag = 'input window, operand 0, single buffered']
    #allocation4 [shape = 's32[1]{0}', space=sflag, size = 0x4, scoped, tag = 'scoped memory for tpu_custom_call.1']
    #allocation5 [shape = 'u8[4096]{0}', space=vmem, size = 0x1000, scoped, tag = 'input window, operand 1, single buffered']
    #allocation6 [shape = 's32[1]{0}', space=sflag, size = 0x4, scoped, tag = 'scoped memory for tpu_custom_call.1']
    #allocation7 [shape = 'u8[6144]{0}', space=vmem, size = 0x1800, scoped, tag = 'input window, operand 2, single buffered']
    %12 = vsyncpa [#allocation4], 0
    %13 = vsyncpa [#allocation6], 0
    // Predicated region
    $region2: #{tpu_custom_call.1} parent=1 // pred_check
      _
    $region3: #{tpu_custom_call.1} parent=1 // pred_check_branch
      %15 = sbr.rel (0) target = $region5
    $region4: #{tpu_custom_call.1} parent=1 // pred_region
      %s17 = ssub.s32 1536, 1536
      %18 = vsyncadd [#allocation4], %s17
      %s20 = sshll.u32 [#allocation3], 4
      %s21 = int_to_ptr.vmem [resolvable:$true] %s20
      %23 = dma.hbm_to_vmem [thread:$0]  %s0, 1536, %s21, [#allocation4]
    $region5: #{tpu_custom_call.1} parent=1 // pred_fallthru
      _
    // Predicated region
    $region6: #{tpu_custom_call.1} parent=1 // pred_check
      _
    $region7: #{tpu_custom_call.1} parent=1 // pred_check_branch
      %25 = sbr.rel (0) target = $region9
    $region8: #{tpu_custom_call.1} parent=1 // pred_region
      %s27 = ssub.s32 128, 128
      %28 = vsyncadd [#allocation6], %s27
      %s30 = sshll.u32 [#allocation5], 4
      %s31 = int_to_ptr.vmem [resolvable:$true] %s30
      %33 = dma.hbm_to_vmem [thread:$0]  %s1, 128, %s31, [#allocation6]
    $region9: #{tpu_custom_call.1} parent=1 // pred_fallthru
      _
    // Predicated region
    $region10: #{tpu_custom_call.1} parent=1 // pred_check
      _
    $region11: #{tpu_custom_call.1} parent=1 // pred_check_branch
      %35 = sbr.rel (0) target = $region13
    $region12: #{tpu_custom_call.1} parent=1 // pred_region
      %s37 = ssub.s32 192, 192
      %38 = vsyncadd [#allocation6], %s37
      %s40 = sshll.u32 [#allocation7], 4
      %s41 = int_to_ptr.vmem [resolvable:$true] %s40
      %43 = dma.hbm_to_vmem [thread:$0]  %s2, 192, %s41, [#allocation6]
    $region13: #{tpu_custom_call.1} parent=1 // pred_fallthru
      _
    // Predicated region
    $region14: #{tpu_custom_call.1} parent=1 // pred_check
      _
    $region15: #{tpu_custom_call.1} parent=1 // pred_check_branch
      %45 = sbr.rel (0) target = $region17
    $region16: #{tpu_custom_call.1} parent=1 // pred_region
      _
    $region17: #{tpu_custom_call.1} parent=1 // pred_fallthru
      _
    // Predicated region
    $region18: #{tpu_custom_call.1} parent=1 // pred_check
      _
    $region19: #{tpu_custom_call.1} parent=1 // pred_check_branch
      %47 = sbr.rel (0) target = $region21
    $region20: #{tpu_custom_call.1} parent=1 // pred_region
      _
    $region21: #{tpu_custom_call.1} parent=1 // pred_fallthru
      _
    // Predicated region
    $region22: #{tpu_custom_call.1} parent=1 // pred_check
      _
    $region23: #{tpu_custom_call.1} parent=1 // pred_check_branch
      %49 = sbr.rel (0) target = $region25
    $region24: #{tpu_custom_call.1} parent=1 // pred_region
      %50 = dma.done [#allocation4], 1536
    $region25: #{tpu_custom_call.1} parent=1 // pred_fallthru
      _
    // Predicated region
    $region26: #{tpu_custom_call.1} parent=1 // pred_check
      _
    $region27: #{tpu_custom_call.1} parent=1 // pred_check_branch
      %52 = sbr.rel (0) target = $region29
    $region28: #{tpu_custom_call.1} parent=1 // pred_region
      %53 = dma.done [#allocation6], 128
    $region29: #{tpu_custom_call.1} parent=1 // pred_fallthru
      _
    // Predicated region
    $region30: #{tpu_custom_call.1} parent=1 // pred_check
      _
    $region31: #{tpu_custom_call.1} parent=1 // pred_check_branch
      %55 = sbr.rel (0) target = $region33
    $region32: #{tpu_custom_call.1} parent=1 // pred_region
      %56 = dma.done [#allocation6], 192
    $region33: #{tpu_custom_call.1} parent=1 // pred_fallthru
      _
    %v57 = vld [vmem:[#allocation3] sm:$0xff]
    %v58 = vld [vmem:[#allocation3 + $0x8] sm:$0xff]
    %v59 = vld [vmem:[#allocation3 + $0x10] sm:$0xff]
    %v60 = vld [vmem:[#allocation3 + $0x18] sm:$0xff]
    %v61 = vld [vmem:[#allocation3 + $0x20] sm:$0xff]
    %v62 = vld [vmem:[#allocation3 + $0x28] sm:$0xff]
    %v63 = vld [vmem:[#allocation3 + $0x30] sm:$0xff]
    %v64 = vld [vmem:[#allocation3 + $0x38] sm:$0xff]
    %v65 = vld [vmem:[#allocation3 + $0x40] sm:$0xff]
    %v66 = vld [vmem:[#allocation3 + $0x48] sm:$0xff]
    %v67 = vld [vmem:[#allocation3 + $0x50] sm:$0xff]
    %v68 = vld [vmem:[#allocation3 + $0x58] sm:$0xff]
    %v69 = vld [vmem:[#allocation5] sm:$0xff]
    %v70 = vld [vmem:[#allocation7] sm:$0xff]
    %v71 = vld [vmem:[#allocation7 + $0x8] sm:$0xf]
    %v72 = vld [vmem:[%s3] sm:$0x1]
    %v75 = vlaneseq
    %v76 = vshrl.u32 %v75, 7
    %v77 = vsub.s32 0, %v76
    %v78 = vrot.slane %v70, %v77
    %v79 = vlaneseq
    %v80 = vshrl.u32 %v79, 7
    %v81 = vsub.s32 1, %v80
    %v82 = vrot.slane %v70, %v81
    %v83 = vlaneseq
    %v84 = vshrl.u32 %v83, 7
    %v85 = vsub.s32 2, %v84
    %v86 = vrot.slane %v70, %v85
    %v87 = vlaneseq
    %v88 = vshrl.u32 %v87, 7
    %v89 = vsub.s32 3, %v88
    %v90 = vrot.slane %v70, %v89
    %v91 = vlaneseq
    %v92 = vshrl.u32 %v91, 7
    %v93 = vsub.s32 4, %v92
    %v94 = vrot.slane %v70, %v93
    %v95 = vlaneseq
    %v96 = vshrl.u32 %v95, 7
    %v97 = vsub.s32 5, %v96
    %v98 = vrot.slane %v70, %v97
    %v99 = vlaneseq
    %v100 = vshrl.u32 %v99, 7
    %v101 = vsub.s32 6, %v100
    %v102 = vrot.slane %v70, %v101
    %v103 = vlaneseq
    %v104 = vshrl.u32 %v103, 7
    %v105 = vsub.s32 7, %v104
    %v106 = vrot.slane %v70, %v105
    %v107 = vlaneseq
    %v108 = vshrl.u32 %v107, 7
    %v109 = vsub.s32 0, %v108
    %v110 = vrot.slane %v71, %v109
    %v111 = vlaneseq
    %v112 = vshrl.u32 %v111, 7
    %v113 = vsub.s32 1, %v112
    %v114 = vrot.slane %v71, %v113
    %v115 = vlaneseq
    %v116 = vshrl.u32 %v115, 7
    %v117 = vsub.s32 2, %v116
    %v118 = vrot.slane %v71, %v117
    %v119 = vlaneseq
    %v120 = vshrl.u32 %v119, 7
    %v121 = vsub.s32 3, %v120
    %v122 = vrot.slane %v71, %v121
    %v135 = vmul.f32 %v57, %v78
    %v136 = vmul.f32 %v58, %v82
    %v137 = vmul.f32 %v59, %v86
    %v138 = vmul.f32 %v60, %v90
    %v139 = vmul.f32 %v61, %v94
    %v140 = vmul.f32 %v62, %v98
    %v141 = vmul.f32 %v63, %v102
    %v142 = vmul.f32 %v64, %v106
    %v143 = vmul.f32 %v65, %v110
    %v144 = vmul.f32 %v66, %v114
    %v145 = vmul.f32 %v67, %v118
    %v146 = vmul.f32 %v68, %v122
    %v147 = vadd.f32 %v135, %v136
    %v148 = vadd.f32 %v147, %v137
    %v149 = vadd.f32 %v148, %v138
    %v150 = vadd.f32 %v149, %v139
    %v151 = vadd.f32 %v150, %v140
    %v152 = vadd.f32 %v151, %v141
    %v153 = vadd.f32 %v152, %v142
    %v154 = vadd.f32 %v153, %v143
    %v155 = vadd.f32 %v154, %v144
    %v156 = vadd.f32 %v155, %v145
    %vm157 = vcmask 138240
    %v158 = vsel %vm157, %v146, 0.0
    %v159 = vadd.f32 %v156, %v158
    %160 = vadd.xlane.f32.xlu0 %v159
    %v161 = vpop.xlane.xlu0 %160
    %v163 = vlaneseq
    %v164 = vshrl.u32 %v163, 7
    %v165 = vsub.s32 0, %v164
    %v166 = vrot.slane %v72, %v165
    %v168 = vmul.f32 %v69, %v166
    %vm169 = vcmask 80896
    %v170 = vsel %vm169, %v168, 0.0
    %171 = vadd.xlane.f32.xlu0 %v170
    %v172 = vpop.xlane.xlu0 %171
    %v173 = vadd.f32 %v161, %v172
    %v174 = vld [vmem:[#allocation2] sm:$0x1]
    %v176 = vlaneseq
    %v177 = vshrl.u32 %v176, 7
    %v178 = vsub.s32 0, %v177
    %v179 = vrot.slane %v174, %v178
    %v181 = vadd.f32 %v173, %v179
    %v182 = vxor.u32 %v181, 2147483648
    %v183 = vmul.f32 %v182, 1.442695
    %v184 = vpow.pop %v183
    %v185 = vadd.f32 %v184, 1.0
    %v186 = vrcp.pop %v185
    %v187 = vmul.f32 1.0, %v186
    %vm188 = vcmask 7168
    %189 = vst.msk [vmem:[%s5] sm:$0xff] %vm188, %v187
    // Predicated region
    $region34: #{tpu_custom_call.1} parent=1 // pred_check
      _
    $region35: #{tpu_custom_call.1} parent=1 // pred_check_branch
      %191 = sbr.rel (0) target = $region37
    $region36: #{tpu_custom_call.1} parent=1 // pred_region
      _
    $region37: #{tpu_custom_call.1} parent=1 // pred_fallthru
      _
    // Predicated region
    $region38: #{tpu_custom_call.1} parent=1 // pred_check
      _
    $region39: #{tpu_custom_call.1} parent=1 // pred_check_branch
      %193 = sbr.rel (0) target = $region41
    $region40: #{tpu_custom_call.1} parent=1 // pred_region
      _
    $region41: #{tpu_custom_call.1} parent=1 // pred_fallthru
      _
    %194 = vsyncpa [#allocation4], 1
    %195 = vsyncpa [#allocation6], 1

</llo_original>
